<compile_context>
chip_gen: v5e
topology: v5e:2x2
jax: 0.10.0
libtpu: 0.0.40
codegen_flags: <defaults>
</compile_context>

<pallas_src>
import functools
import math

import numpy as np
import jax
import jax.numpy as jnp
from jax.experimental import pallas as pl
from jax.experimental.pallas import tpu as pltpu


def _round_up(x, m):
    return ((x + m - 1) // m) * m


def _orthogonal_init_np(rng, rows, cols, gain):
    """Host-side equivalent of torch.nn.init.orthogonal_(W, gain)."""
    transpose = rows < cols
    a = rng.standard_normal((max(rows, cols), min(rows, cols))).astype(np.float32)
    q, r = np.linalg.qr(a)
    d = np.sign(np.diag(r))
    d[d == 0] = 1.0            # avoid zeroing a column on a 0 diagonal
    q = q * d[None, :]
    if transpose:
        q = q.T
    return (gain * q[:rows, :cols]).astype(np.float32)


# ---------------------------------------------------------------------------
# Kernel
# ---------------------------------------------------------------------------
def linvec_kernel(h_ref, wt_ref, b_ref, o_ref):
    # h_ref:  (tm, Kp)  bf16 batch-row tile
    # wt_ref: (Kp, Np)  bf16 full (padded, pre-transposed) weight, VMEM-resident
    # b_ref:  (1,  Np)  f32 bias
    # o_ref:  (tm, Np)  f32 output tile (lane-dense: Np % 128 == 0)
    acc = jnp.dot(h_ref[...], wt_ref[...], preferred_element_type=jnp.float32)
    acc = acc + b_ref[...]                                      # broadcast bias
    o_ref[...] = jnp.maximum(acc, 0.0).astype(o_ref.dtype)      # ReLU


# ---------------------------------------------------------------------------
# Forward pass (jit wrapper around pallas_call)
# ---------------------------------------------------------------------------
@functools.partial(jax.jit, static_argnames=("in_features", "out_features"))
def lin_vec_encoder_fwd(h, w_t, b2d, *, in_features, out_features):
    """h: (batch, in_features) f32; w_t: (Kp, Np) bf16 padded transposed weight;
    b2d: (1, Np) f32 padded bias. Returns (batch, out_features) f32."""
    batch = h.shape[0]
    kp, npad = w_t.shape

    # Row tile: multiple of 128, capped at 256; >= 2 grid blocks whenever the
    # padded batch allows so both TensorCores / megacore halves get work.
    bm0 = _round_up(batch, 128)
    tm = 128 if bm0 <= 256 else 256
    padded_batch = _round_up(batch, tm)
    grid_m = padded_batch // tm

    # Zero-pad h to (padded_batch, Kp) and cast to the weight dtype. Zero
    # K-padding contributes nothing to the matmul; padded rows are sliced off.
    h_p = jnp.zeros((padded_batch, kp), w_t.dtype)
    h_p = h_p.at[:batch, :in_features].set(h.astype(w_t.dtype))

    # Explicit VMEM budget: double-buffered h / out tiles + (possibly
    # double-buffered) resident weight + bias + headroom.
    itemsize_w = jnp.dtype(w_t.dtype).itemsize
    vmem_bytes = int(
        2 * tm * kp * itemsize_w        # h tiles (double-buffered)
        + 2 * tm * npad * 4             # out tiles (double-buffered, f32)
        + 2 * kp * npad * itemsize_w    # weight (allow for double buffering)
        + 2 * npad * 4                  # bias
    ) + (4 << 20)
    vmem_bytes = min(max(vmem_bytes, 32 << 20), 100 << 20)
    # TODO(synk): weights too large to sit in VMEM (esp. v7x's 64 MiB) need a
    # K/N-tiled reduction grid with a pl.when-initialized accumulator instead
    # of the resident-weight layout used here.

    out_padded = pl.pallas_call(
        linvec_kernel,
        out_shape=jax.ShapeDtypeStruct((padded_batch, npad), jnp.float32),
        grid_spec=pltpu.PrefetchScalarGridSpec(
            num_scalar_prefetch=0,
            grid=(grid_m,),
            in_specs=[
                pl.BlockSpec((tm, kp), lambda i: (i, 0)),
                # Constant block index -> weight & bias DMA'd once, reused
                # across every batch tile.
                pl.BlockSpec((kp, npad), lambda i: (0, 0)),
                pl.BlockSpec((1, npad), lambda i: (0, 0)),
            ],
            out_specs=pl.BlockSpec((tm, npad), lambda i: (i, 0)),
        ),
        compiler_params=pltpu.CompilerParams(
            dimension_semantics=("parallel",),
            vmem_limit_bytes=vmem_bytes),
    )(h_p, w_t, b2d)

    return out_padded[:batch, :out_features]


# ---------------------------------------------------------------------------
# Module-style wrapper (parameters prepared once, outside the forward path)
# ---------------------------------------------------------------------------
class LinVecEncoder:
    def __init__(self, in_features, out_features, seed=0, weight_dtype=jnp.bfloat16):
        rng = np.random.default_rng(seed)
        w_np = _orthogonal_init_np(rng, out_features, in_features, gain=math.sqrt(2.0))
        bound = 1.0 / math.sqrt(in_features)
        b_np = rng.uniform(-bound, bound, size=(out_features,)).astype(np.float32)

        self.in_features = in_features
        self.out_features = out_features
        self.w = jnp.asarray(w_np)       # (out, in) f32, PyTorch Linear layout
        self.b = jnp.asarray(b_np)       # (out,) f32

        # One-time prep (outside the forward path): transpose + pad feature
        # dims to 128 multiples + cast to bf16 for the HBM weight stream.
        kp = _round_up(max(in_features, 128), 128)
        npad = _round_up(max(out_features, 128), 128)
        w_t = np.zeros((kp, npad), dtype=np.float32)
        w_t[:in_features, :out_features] = w_np.T
        self.w_t = jnp.asarray(w_t, dtype=weight_dtype)
        b2d = np.zeros((1, npad), dtype=np.float32)
        b2d[0, :out_features] = b_np
        self.b2d = jnp.asarray(b2d)

    def __call__(self, h):
        # TODO(synk): for tiny problems (batch*in*out << 1e6) a plain XLA
        # jnp.maximum(h @ w.T + b, 0) avoids the pallas_call fixed overhead.
        return lin_vec_encoder_fwd(h, self.w_t, self.b2d,
                                   in_features=self.in_features,
                                   out_features=self.out_features)


if __name__ == "__main__":
    # Small shapes: ragged batch + non-128-multiple features exercise the
    # pad / slice paths while keeping the run light.
    batch, in_features, out_features = 8, 32, 64

    enc = LinVecEncoder(in_features, out_features, seed=0)
    h = jax.random.normal(jax.random.PRNGKey(0), (batch, in_features),
                          dtype=jnp.float32)

    out = jax.block_until_ready(enc(h))

    # Reference with identically bf16-quantized operands, f32 accumulation.
    hq = h.astype(jnp.bfloat16).astype(jnp.float32)
    wq = enc.w.astype(jnp.bfloat16).astype(jnp.float32)
    ref = jnp.maximum(
        jnp.dot(hq, wq.T, precision=jax.lax.Precision.HIGHEST) + enc.b[None, :],
        0.0)

    assert out.shape == (batch, out_features)
    assert bool(jnp.allclose(out, ref, atol=5e-3, rtol=1e-3)), "mismatch vs reference"
    print("KERNEL_OK")
</pallas_src>

<mosaic_0001>
module attributes {stable_mosaic.version = 11 : i64} {
  func.func @linvec_kernel(%arg0: i32, %arg1: memref<128x128xbf16, #tpu.memory_space<vmem>>, %arg2: memref<128x128xbf16, #tpu.memory_space<vmem>>, %arg3: memref<1x128xf32, #tpu.memory_space<vmem>>, %arg4: memref<128x128xf32, #tpu.memory_space<vmem>>) attributes {dimension_semantics = [#tpu.dimension_semantics<parallel>], iteration_bounds = array<i64: 1>, scalar_prefetch = 0 : i64, scratch_operands = 0 : i64, tpu.core_type = #tpu.core_type<tc>, window_params = [{transform_indices = @transform_0, window_bounds = array<i64: 128, 128>}, {pipeline_mode = #tpu.pipeline_mode<synchronous>, transform_indices = @transform_1, window_bounds = array<i64: 128, 128>}, {pipeline_mode = #tpu.pipeline_mode<synchronous>, transform_indices = @transform_2, window_bounds = array<i64: 1, 128>}, {transform_indices = @transform_3, window_bounds = array<i64: 128, 128>}]} {
    %c0 = arith.constant 0 : index
    %c0_0 = arith.constant 0 : index
    %0 = vector.load %arg1[%c0, %c0_0] : memref<128x128xbf16, #tpu.memory_space<vmem>>, vector<128x128xbf16>
    %c0_1 = arith.constant 0 : index
    %c0_2 = arith.constant 0 : index
    %1 = vector.load %arg2[%c0_1, %c0_2] : memref<128x128xbf16, #tpu.memory_space<vmem>>, vector<128x128xbf16>
    %cst = arith.constant dense<0.000000e+00> : vector<128x128xf32>
    %2 = tpu.matmul %0, %1, %cst {dimension_numbers = #tpu.dot_dimension_numbers<[1], [0], [0], [1], [0, 0, 1, 1], [], []>} : vector<128x128xbf16>, vector<128x128xbf16>, vector<128x128xf32> -> vector<128x128xf32>
    %c0_3 = arith.constant 0 : index
    %c0_4 = arith.constant 0 : index
    %3 = vector.load %arg3[%c0_3, %c0_4] : memref<1x128xf32, #tpu.memory_space<vmem>>, vector<1x128xf32>
    %4 = vector.broadcast %3 : vector<1x128xf32> to vector<128x128xf32>
    %5 = arith.addf %2, %4 : vector<128x128xf32>
    %cst_5 = arith.constant 0.000000e+00 : f32
    %6 = vector.broadcast %cst_5 : f32 to vector<128x128xf32>
    %7 = arith.maximumf %5, %6 : vector<128x128xf32>
    %c0_6 = arith.constant 0 : index
    %c0_7 = arith.constant 0 : index
    %8 = vector.load %arg4[%c0_6, %c0_7] : memref<128x128xf32, #tpu.memory_space<vmem>>, vector<128x128xf32>
    tpu.vector_store %arg4[%c0_6, %c0_7], %7 {strides = array<i32>} : memref<128x128xf32, #tpu.memory_space<vmem>>, vector<128x128xf32>,
    return
  }
  func.func @transform_0(%arg0: i32) -> (i32, i32) {
    %c0_i32 = arith.constant 0 : i32
    %c0_i32_0 = arith.constant 0 : i32
    return %arg0, %c0_i32 : i32, i32
  }
  func.func @transform_1(%arg0: i32) -> (i32, i32) {
    %c0_i32 = arith.constant 0 : i32
    %c0_i32_0 = arith.constant 0 : i32
    %c0_i32_1 = arith.constant 0 : i32
    return %c0_i32, %c0_i32_0 : i32, i32
  }
  func.func @transform_2(%arg0: i32) -> (i32, i32) {
    %c0_i32 = arith.constant 0 : i32
    %c0_i32_0 = arith.constant 0 : i32
    %c0_i32_1 = arith.constant 0 : i32
    return %c0_i32, %c0_i32_0 : i32, i32
  }
  func.func @transform_3(%arg0: i32) -> (i32, i32) {
    %c0_i32 = arith.constant 0 : i32
    %c0_i32_0 = arith.constant 0 : i32
    return %arg0, %c0_i32 : i32, i32
  }
}

</mosaic_0001>

<llo_original>
// kernel: lin_vec_encoder_fwd.1
$region0: #{lin_vec_encoder_fwd.1}
  #allocation0 [shape = 'u32[]', space=smem, size = 0x4, offset = 0x4, fixed_abs, tag = 'smem constant byte address 0x4 - core index']
  #allocation1 [shape = 'u32[72,128]{1,0:T(1,128)}', space=vmem, size = 0x9000, scoped, tag = 'internal scratch']
  %s0 = inlined_call_operand.vmem [shape: bf16[128,128], index: 0, kind: input, shape index: {}]
  %s1 = inlined_call_operand.vmem [shape: bf16[128,128], index: 1, kind: input, shape index: {}]
  %s2 = inlined_call_operand.vmem [shape: f32[1,128], index: 2, kind: input, shape index: {}]
  %s3 = inlined_call_operand.vmem [shape: f32[128,128], index: 3, kind: output, shape index: {}]
  %s4 = sld [smem:[#allocation0]]
  $region22: #{lin_vec_encoder_fwd.1} parent=0
    _
  %s6 = ssub.s32 1, %s4
  %s7 = scalar_select 0, %s6, %s4
  // Predicated region
  $region2: #{lin_vec_encoder_fwd.1} parent=0 // pred_check
    _
  $region3: #{lin_vec_encoder_fwd.1} parent=0 // pred_check_branch
    %9 = sbr.rel (0) target = $region5
  $region4: #{lin_vec_encoder_fwd.1} parent=0 // pred_region
    _
  $region5: #{lin_vec_encoder_fwd.1} parent=0 // pred_fallthru
    _
  // Predicated region
  $region6: #{lin_vec_encoder_fwd.1} parent=0 // pred_check
    _
  $region7: #{lin_vec_encoder_fwd.1} parent=0 // pred_check_branch
    %11 = sbr.rel (0) target = $region9
  $region8: #{lin_vec_encoder_fwd.1} parent=0 // pred_region
    _
  $region9: #{lin_vec_encoder_fwd.1} parent=0 // pred_fallthru
    _
  // Predicated region
  $region10: #{lin_vec_encoder_fwd.1} parent=0 // pred_check
    _
  $region11: #{lin_vec_encoder_fwd.1} parent=0 // pred_check_branch
    %13 = sbr.rel (0) target = $region13
  $region12: #{lin_vec_encoder_fwd.1} parent=0 // pred_region
    _
  $region13: #{lin_vec_encoder_fwd.1} parent=0 // pred_fallthru
    _
  %v14 = vld [vmem:[%s0] sm:$0xf]
  %v15 = vld [vmem:[%s0 + $0x4] sm:$0xf]
  %v16 = vld [vmem:[%s0 + $0x8] sm:$0xf]
  %v17 = vld [vmem:[%s0 + $0xc] sm:$0xf]
  %v18 = vld [vmem:[%s0 + $0x10] sm:$0xf]
  %v19 = vld [vmem:[%s0 + $0x14] sm:$0xf]
  %v20 = vld [vmem:[%s0 + $0x18] sm:$0xf]
  %v21 = vld [vmem:[%s0 + $0x1c] sm:$0xf]
  %v22 = vld [vmem:[%s0 + $0x20] sm:$0xf]
  %v23 = vld [vmem:[%s0 + $0x24] sm:$0xf]
  %v24 = vld [vmem:[%s0 + $0x28] sm:$0xf]
  %v25 = vld [vmem:[%s0 + $0x2c] sm:$0xf]
  %v26 = vld [vmem:[%s0 + $0x30] sm:$0xf]
  %v27 = vld [vmem:[%s0 + $0x34] sm:$0xf]
  %v28 = vld [vmem:[%s0 + $0x38] sm:$0xf]
  %v29 = vld [vmem:[%s0 + $0x3c] sm:$0xf]
  %v30 = vld [vmem:[%s1] sm:$0xf]
  %v31 = vld [vmem:[%s1 + $0x4] sm:$0xf]
  %v32 = vld [vmem:[%s1 + $0x8] sm:$0xf]
  %v33 = vld [vmem:[%s1 + $0xc] sm:$0xf]
  %v34 = vld [vmem:[%s1 + $0x10] sm:$0xf]
  %v35 = vld [vmem:[%s1 + $0x14] sm:$0xf]
  %v36 = vld [vmem:[%s1 + $0x18] sm:$0xf]
  %v37 = vld [vmem:[%s1 + $0x1c] sm:$0xf]
  %v38 = vld [vmem:[%s1 + $0x20] sm:$0xf]
  %v39 = vld [vmem:[%s1 + $0x24] sm:$0xf]
  %v40 = vld [vmem:[%s1 + $0x28] sm:$0xf]
  %v41 = vld [vmem:[%s1 + $0x2c] sm:$0xf]
  %v42 = vld [vmem:[%s1 + $0x30] sm:$0xf]
  %v43 = vld [vmem:[%s1 + $0x34] sm:$0xf]
  %v44 = vld [vmem:[%s1 + $0x38] sm:$0xf]
  %v45 = vld [vmem:[%s1 + $0x3c] sm:$0xf]
  %v46 = vld [vmem:[%s2] sm:$0x1]
  %v48 = vperm.slane %v46, 0
  %v66 = vunpack.c.l.b16 %v14
  %v67 = vunpack.c.l.b16 %v15
  %v68 = vunpack.c.l.b16 %v16
  %v69 = vunpack.c.l.b16 %v17
  %v70 = vunpack.c.l.b16 %v18
  %v71 = vunpack.c.l.b16 %v19
  %v72 = vunpack.c.l.b16 %v20
  %v73 = vunpack.c.l.b16 %v21
  %v74 = vunpack.c.l.b16 %v22
  %v75 = vunpack.c.l.b16 %v23
  %v76 = vunpack.c.l.b16 %v24
  %v77 = vunpack.c.l.b16 %v25
  %v78 = vunpack.c.l.b16 %v26
  %v79 = vunpack.c.l.b16 %v27
  %v80 = vunpack.c.l.b16 %v28
  %v81 = vunpack.c.l.b16 %v29
  %v82 = vpack.c.b16 %v67, %v66
  %v83 = vpack.c.b16 %v69, %v68
  %v84 = vpack.c.b16 %v71, %v70
  %v85 = vpack.c.b16 %v73, %v72
  %v86 = vpack.c.b16 %v75, %v74
  %v87 = vpack.c.b16 %v77, %v76
  %v88 = vpack.c.b16 %v79, %v78
  %v89 = vpack.c.b16 %v81, %v80
  %v114 = vunpack.c.l.b16 %v30
  %v115 = vunpack.c.l.b16 %v31
  %v116 = vunpack.c.l.b16 %v32
  %v117 = vunpack.c.l.b16 %v33
  %v118 = vunpack.c.l.b16 %v34
  %v119 = vunpack.c.l.b16 %v35
  %v120 = vunpack.c.l.b16 %v36
  %v121 = vunpack.c.l.b16 %v37
  %v122 = vunpack.c.l.b16 %v38
  %v123 = vunpack.c.l.b16 %v39
  %v124 = vunpack.c.l.b16 %v40
  %v125 = vunpack.c.l.b16 %v41
  %v126 = vunpack.c.l.b16 %v42
  %v127 = vunpack.c.l.b16 %v43
  %v128 = vunpack.c.l.b16 %v44
  %v129 = vunpack.c.l.b16 %v45
  %v130 = vpack.c.b16 %v115, %v114
  %v131 = vpack.c.b16 %v117, %v116
  %v132 = vpack.c.b16 %v119, %v118
  %v133 = vpack.c.b16 %v121, %v120
  %v134 = vpack.c.b16 %v123, %v122
  %v135 = vpack.c.b16 %v125, %v124
  %v136 = vpack.c.b16 %v127, %v126
  %v137 = vpack.c.b16 %v129, %v128
  %146 = vmatpush.bf16.msra.mxu0 %v137
  %147 = vmatpush.bf16.msra.mxu0 %v136
  %148 = vmatpush.bf16.msra.mxu0 %v135
  %149 = vmatpush.bf16.msra.mxu0 %v134
  %150 = vmatpush.bf16.msra.mxu0 %v133
  %151 = vmatpush.bf16.msra.mxu0 %v132
  %152 = vmatpush.bf16.msra.mxu0 %v131
  %153 = vmatpush.bf16.msra.mxu0 %v130
  %154 = vmatmul.bf16.gmra.mxu0 %v82
  %v155 = vpop.f32.mrf.mxu0
  %v156 = vadd.f32 %v48, %v155
  %v157 = vpop.f32.mrf.mxu0
  %v158 = vadd.f32 %v48, %v157
  %159 = vmatmul.bf16.gmra.mxu0 %v83
  %v160 = vpop.f32.mrf.mxu0
  %v161 = vadd.f32 %v48, %v160
  %v162 = vpop.f32.mrf.mxu0
  %v163 = vadd.f32 %v48, %v162
  %164 = vmatmul.bf16.gmra.mxu0 %v84
  %v165 = vpop.f32.mrf.mxu0
  %v166 = vadd.f32 %v48, %v165
  %v167 = vpop.f32.mrf.mxu0
  %v168 = vadd.f32 %v48, %v167
  %169 = vmatmul.bf16.gmra.mxu0 %v85
  %v170 = vpop.f32.mrf.mxu0
  %v171 = vadd.f32 %v48, %v170
  %v172 = vpop.f32.mrf.mxu0
  %v173 = vadd.f32 %v48, %v172
  %174 = vmatmul.bf16.gmra.mxu0 %v86
  %v175 = vpop.f32.mrf.mxu0
  %v176 = vadd.f32 %v48, %v175
  %v177 = vpop.f32.mrf.mxu0
  %v178 = vadd.f32 %v48, %v177
  %179 = vmatmul.bf16.gmra.mxu0 %v87
  %v180 = vpop.f32.mrf.mxu0
  %v181 = vadd.f32 %v48, %v180
  %v182 = vpop.f32.mrf.mxu0
  %v183 = vadd.f32 %v48, %v182
  %184 = vmatmul.bf16.gmra.mxu0 %v88
  %v185 = vpop.f32.mrf.mxu0
  %v186 = vadd.f32 %v48, %v185
  %v187 = vpop.f32.mrf.mxu0
  %v188 = vadd.f32 %v48, %v187
  %189 = vmatmul.bf16.gmra.mxu0 %v89
  %v190 = vpop.f32.mrf.mxu0
  %v191 = vadd.f32 %v48, %v190
  %v192 = vpop.f32.mrf.mxu0
  %v193 = vadd.f32 %v48, %v192
  %194 = vdwg.mxu0
  %v195 = vmax.f32 %v156, 0.0
  %v196 = vmax.f32 %v158, 0.0
  %v197 = vmax.f32 %v161, 0.0
  %v198 = vmax.f32 %v163, 0.0
  %v199 = vmax.f32 %v166, 0.0
  %v200 = vmax.f32 %v168, 0.0
  %v201 = vmax.f32 %v171, 0.0
  %v202 = vmax.f32 %v173, 0.0
  %v203 = vmax.f32 %v176, 0.0
  %v204 = vmax.f32 %v178, 0.0
  %v205 = vmax.f32 %v181, 0.0
  %v206 = vmax.f32 %v183, 0.0
  %v207 = vmax.f32 %v186, 0.0
  %v208 = vmax.f32 %v188, 0.0
  %v209 = vmax.f32 %v191, 0.0
  %v210 = vmax.f32 %v193, 0.0
  %211 = vst [vmem:[%s3] sm:$0xff] %v195
  %212 = vst [vmem:[%s3 + $0x8] sm:$0xff] %v196
  %213 = vst [vmem:[%s3 + $0x10] sm:$0xff] %v197
  %214 = vst [vmem:[%s3 + $0x18] sm:$0xff] %v198
  %215 = vst [vmem:[%s3 + $0x20] sm:$0xff] %v199
  %216 = vst [vmem:[%s3 + $0x28] sm:$0xff] %v200
  %217 = vst [vmem:[%s3 + $0x30] sm:$0xff] %v201
  %218 = vst [vmem:[%s3 + $0x38] sm:$0xff] %v202
  %219 = vst [vmem:[%s3 + $0x40] sm:$0xff] %v203
  %220 = vst [vmem:[%s3 + $0x48] sm:$0xff] %v204
  %221 = vst [vmem:[%s3 + $0x50] sm:$0xff] %v205
  %222 = vst [vmem:[%s3 + $0x58] sm:$0xff] %v206
  %223 = vst [vmem:[%s3 + $0x60] sm:$0xff] %v207
  %224 = vst [vmem:[%s3 + $0x68] sm:$0xff] %v208
  %225 = vst [vmem:[%s3 + $0x70] sm:$0xff] %v209
  %226 = vst [vmem:[%s3 + $0x78] sm:$0xff] %v210
  // Predicated region
  $region14: #{lin_vec_encoder_fwd.1} parent=0 // pred_check
    _
  $region15: #{lin_vec_encoder_fwd.1} parent=0 // pred_check_branch
    %228 = sbr.rel (0) target = $region17
  $region16: #{lin_vec_encoder_fwd.1} parent=0 // pred_region
    _
  $region17: #{lin_vec_encoder_fwd.1} parent=0 // pred_fallthru
    _
  // Predicated region
  $region18: #{lin_vec_encoder_fwd.1} parent=0 // pred_check
    _
  $region19: #{lin_vec_encoder_fwd.1} parent=0 // pred_check_branch
    %230 = sbr.rel (0) target = $region21
  $region20: #{lin_vec_encoder_fwd.1} parent=0 // pred_region
    _
  $region21: #{lin_vec_encoder_fwd.1} parent=0 // pred_fallthru
    _

</llo_original>
